<compile_context>
chip_gen: v5e
topology: v5e:2x2
jax: 0.10.0
libtpu: 0.0.40
codegen_flags: <defaults>
</compile_context>

<pallas_src>
import math
from functools import partial

import jax
import jax.numpy as jnp
from jax import lax
from jax.experimental import pallas as pl
from jax.experimental.pallas import tpu as pltpu


def _disc_mlp_kernel(x_ref, w1_ref, w2_ref, w3_ref, pk_ref, out_ref):
    """One batch tile of the 4-layer discriminator MLP, fully in VMEM.

    x_ref  : (TM, Kp)   bf16   concatenated [seq_flat | expression], K zero-padded
    w1_ref : (Kp, 512)  bf16   (zero rows for the K padding -> exact)
    w2_ref : (512, 256) bf16
    w3_ref : (256, 128) bf16
    pk_ref : (8, 512)   f32    packed [b1 | b2 | b3 | w4 | b4]
    out_ref: (1, TM)    f32    lane-dense sigmoid outputs for this tile
    """
    # Layer 1: single merged matmul (bf16 in, f32 accumulate), bias + ReLU in f32.
    b1 = pk_ref[0:1, 0:512]
    h = jnp.dot(x_ref[...], w1_ref[...], preferred_element_type=jnp.float32)
    h = jnp.maximum(h + b1, 0.0)

    # Layer 2.
    b2 = pk_ref[1:2, 0:256]
    h = jnp.dot(h.astype(jnp.bfloat16), w2_ref[...],
                preferred_element_type=jnp.float32)
    h = jnp.maximum(h + b2, 0.0)

    # Layer 3.
    b3 = pk_ref[2:3, 0:128]
    h = jnp.dot(h.astype(jnp.bfloat16), w3_ref[...],
                preferred_element_type=jnp.float32)
    h = jnp.maximum(h + b3, 0.0)

    # Layer 4 (128 -> 1): contract the 128 axis with w4 as the 1-row LHS so the
    # result is a lane-dense [1, TM] row (no (TM, 1) masked column stores).
    w4 = pk_ref[3:4, 0:128]
    logits = lax.dot_general(
        w4.astype(jnp.bfloat16), h.astype(jnp.bfloat16),
        dimension_numbers=(((1,), (1,)), ((), ())),
        preferred_element_type=jnp.float32)                 # (1, TM)
    logits = logits + pk_ref[4:5, 0:1]                      # + b4 (broadcast)
    out_ref[...] = jax.nn.sigmoid(logits).astype(out_ref.dtype)


def init_discriminator_params(key, sequence_length, expression_dim,
                              dtype=jnp.float32):
    """Deterministic init mimicking torch.nn.Linear's U(-1/sqrt(fan_in), ...)."""
    seq_dim = sequence_length * 4
    in_dim = seq_dim + expression_dim
    params = {}

    def _uniform(k, shape, bound):
        return jax.random.uniform(k, shape, dtype=dtype,
                                  minval=-bound, maxval=bound)

    key, kw, kb = jax.random.split(key, 3)
    bound = 1.0 / math.sqrt(in_dim)
    params["w1"] = _uniform(kw, (in_dim, 512), bound)   # [in, out]
    params["b1"] = _uniform(kb, (512,), bound)

    key, kw, kb = jax.random.split(key, 3)
    bound = 1.0 / math.sqrt(512)
    params["w2"] = _uniform(kw, (512, 256), bound)
    params["b2"] = _uniform(kb, (256,), bound)

    key, kw, kb = jax.random.split(key, 3)
    bound = 1.0 / math.sqrt(256)
    params["w3"] = _uniform(kw, (256, 128), bound)
    params["b3"] = _uniform(kb, (128,), bound)

    key, kw, kb = jax.random.split(key, 3)
    bound = 1.0 / math.sqrt(128)
    params["w4"] = _uniform(kw, (128,), bound)
    params["b4"] = _uniform(kb, (1,), bound)
    return params


def _round_up(x, m):
    return ((x + m - 1) // m) * m


@partial(jax.jit, static_argnames=("block_batch",))
def discriminator_forward(sequence, expression, params, *, block_batch=512):
    """sequence: [B, L, 4], expression: [B, E] -> sigmoid outputs [B, 1]."""
    B = sequence.shape[0]
    seq_flat = sequence.reshape(B, -1)
    Ds = seq_flat.shape[1]
    De = expression.shape[1]
    K = Ds + De
    Kp = max(128, _round_up(K, 128))          # lane-pad the contraction dim

    # --- fused prep (all under this jit): concat -> bf16 cast -> pad ----------
    x = jnp.concatenate([seq_flat, expression], axis=1).astype(jnp.bfloat16)
    w1 = params["w1"].astype(jnp.bfloat16)
    if Kp != K:
        x = jnp.pad(x, ((0, 0), (0, Kp - K)))
        w1 = jnp.pad(w1, ((0, Kp - K), (0, 0)))     # zero rows -> exact math
    w2 = params["w2"].astype(jnp.bfloat16)
    w3 = params["w3"].astype(jnp.bfloat16)

    # Packed small operands: one (8, 512) f32 tile instead of 5 tiny streams.
    pack = jnp.zeros((8, 512), jnp.float32)
    pack = pack.at[0, :512].set(params["b1"].astype(jnp.float32))
    pack = pack.at[1, :256].set(params["b2"].astype(jnp.float32))
    pack = pack.at[2, :128].set(params["b3"].astype(jnp.float32))
    pack = pack.at[3, :128].set(params["w4"].astype(jnp.float32))
    pack = pack.at[4, 0].set(params["b4"].astype(jnp.float32)[0])

    # --- batch tiling: >= 2 tiles for realistic batches (v7x megacore), large
    # tiles to amortize per-step overhead (v5e/v6e). ---------------------------
    tm = min(block_batch, _round_up(max(1, pl.cdiv(B, 2)), 8))
    bp = _round_up(B, tm)
    if bp != B:
        x = jnp.pad(x, ((0, bp - B), (0, 0)))
    num_tiles = bp // tm

    in_specs = [
        pl.BlockSpec((tm, Kp), lambda i: (i, 0)),        # x tile   (pipelined)
        pl.BlockSpec((Kp, 512), lambda i: (0, 0)),       # weights: constant index
        pl.BlockSpec((512, 256), lambda i: (0, 0)),      #   -> resident in VMEM
        pl.BlockSpec((256, 128), lambda i: (0, 0)),
        pl.BlockSpec((8, 512), lambda i: (0, 0)),        # packed biases + w4/b4
    ]
    # Lane-dense output: one [1, TM] row per tile (leading grid dim squeezed).
    out_spec = pl.BlockSpec((None, 1, tm), lambda i: (i, 0, 0))

    weight_elems = Kp * 512 + 512 * 256 + 256 * 128 + 128
    flops = 2 * bp * weight_elems
    bytes_accessed = (2 * bp * Kp            # bf16 activations in
                      + 2 * weight_elems     # bf16 weights
                      + 4 * 8 * 512          # f32 packed biases
                      + 4 * bp)              # f32 output
    cost = pl.CostEstimate(flops=flops, transcendentals=bp,
                           bytes_accessed=bytes_accessed)

    out = pl.pallas_call(
        _disc_mlp_kernel,
        out_shape=jax.ShapeDtypeStruct((num_tiles, 1, tm), jnp.float32),
        grid=(num_tiles,),
        in_specs=in_specs,
        out_specs=out_spec,
        compiler_params=pltpu.CompilerParams(
            dimension_semantics=("parallel",),        # megacore-shard batch (v7x)
            vmem_limit_bytes=32 * 1024 * 1024),       # v5e default is only 16 MiB
        cost_estimate=cost,
    )(x, w1, w2, w3, pack)

    # (num_tiles, 1, tm) -> [B, 1]; padded rows dropped.
    return out.reshape(-1)[:B].reshape(B, 1)


def _reference_forward(sequence, expression, params):
    """Pure f32 JAX reference (same math as the torch nn.Linear stack)."""
    B = sequence.shape[0]
    x = jnp.concatenate([sequence.reshape(B, -1), expression], axis=1)
    h = jax.nn.relu(x @ params["w1"] + params["b1"])
    h = jax.nn.relu(h @ params["w2"] + params["b2"])
    h = jax.nn.relu(h @ params["w3"] + params["b3"])
    logits = h @ params["w4"].reshape(-1, 1) + params["b4"]
    return jax.nn.sigmoid(logits)


if __name__ == "__main__":
    # Small shapes consistent with the module's forward.
    batch = 2
    sequence_length = 8      # -> sequence_flat dim = 32
    expression_dim = 32

    key = jax.random.PRNGKey(0)
    k_seq, k_expr, k_params = jax.random.split(key, 3)

    sequence = jax.random.normal(
        k_seq, (batch, sequence_length, 4), dtype=jnp.float32)
    expression = jax.random.normal(
        k_expr, (batch, expression_dim), dtype=jnp.float32)

    params = init_discriminator_params(k_params, sequence_length, expression_dim)

    out = discriminator_forward(sequence, expression, params)
    out = jax.block_until_ready(out)

    ref = _reference_forward(sequence, expression, params)
    assert out.shape == (batch, 1), out.shape
    # bf16 MXU operands vs f32 reference -> relaxed tolerance (sigmoid outputs).
    assert jnp.allclose(out, ref, atol=5e-2, rtol=5e-2), (out, ref)

    print("KERNEL_OK")
</pallas_src>

<mosaic_0001>
module attributes {stable_mosaic.version = 11 : i64} {
  func.func @_disc_mlp_kernel(%arg0: i32, %arg1: memref<8x128xbf16, #tpu.memory_space<vmem>>, %arg2: memref<128x512xbf16, #tpu.memory_space<vmem>>, %arg3: memref<512x256xbf16, #tpu.memory_space<vmem>>, %arg4: memref<256x128xbf16, #tpu.memory_space<vmem>>, %arg5: memref<8x512xf32, #tpu.memory_space<vmem>>, %arg6: memref<1x1x8xf32, #tpu.memory_space<vmem>>) attributes {dimension_semantics = [#tpu.dimension_semantics<parallel>], iteration_bounds = array<i64: 1>, scalar_prefetch = 0 : i64, scratch_operands = 0 : i64, tpu.core_type = #tpu.core_type<tc>, window_params = [{transform_indices = @transform_0, window_bounds = array<i64: 8, 128>}, {pipeline_mode = #tpu.pipeline_mode<synchronous>, transform_indices = @transform_1, window_bounds = array<i64: 128, 512>}, {pipeline_mode = #tpu.pipeline_mode<synchronous>, transform_indices = @transform_2, window_bounds = array<i64: 512, 256>}, {pipeline_mode = #tpu.pipeline_mode<synchronous>, transform_indices = @transform_3, window_bounds = array<i64: 256, 128>}, {pipeline_mode = #tpu.pipeline_mode<synchronous>, transform_indices = @transform_4, window_bounds = array<i64: 8, 512>}, {transform_indices = @transform_5, window_bounds = array<i64: 1, 1, 8>}]} {
    %c0 = arith.constant 0 : index
    %c0_0 = arith.constant 0 : index
    %0 = vector.load %arg5[%c0, %c0_0] : memref<8x512xf32, #tpu.memory_space<vmem>>, vector<1x512xf32>
    %c0_1 = arith.constant 0 : index
    %c0_2 = arith.constant 0 : index
    %1 = vector.load %arg1[%c0_1, %c0_2] : memref<8x128xbf16, #tpu.memory_space<vmem>>, vector<8x128xbf16>
    %c0_3 = arith.constant 0 : index
    %c0_4 = arith.constant 0 : index
    %2 = vector.load %arg2[%c0_3, %c0_4] : memref<128x512xbf16, #tpu.memory_space<vmem>>, vector<128x512xbf16>
    %cst = arith.constant dense<0.000000e+00> : vector<8x512xf32>
    %3 = tpu.matmul %1, %2, %cst {dimension_numbers = #tpu.dot_dimension_numbers<[1], [0], [0], [1], [0, 0, 1, 1], [], []>} : vector<8x128xbf16>, vector<128x512xbf16>, vector<8x512xf32> -> vector<8x512xf32>
    %4 = vector.broadcast %0 : vector<1x512xf32> to vector<8x512xf32>
    %5 = arith.addf %3, %4 : vector<8x512xf32>
    %cst_5 = arith.constant 0.000000e+00 : f32
    %6 = vector.broadcast %cst_5 : f32 to vector<8x512xf32>
    %7 = arith.maximumf %5, %6 : vector<8x512xf32>
    %c1 = arith.constant 1 : index
    %c0_6 = arith.constant 0 : index
    %8 = vector.load %arg5[%c1, %c0_6] : memref<8x512xf32, #tpu.memory_space<vmem>>, vector<1x256xf32>
    %9 = arith.truncf %7 : vector<8x512xf32> to vector<8x512xbf16>
    %c0_7 = arith.constant 0 : index
    %c0_8 = arith.constant 0 : index
    %10 = vector.load %arg3[%c0_7, %c0_8] : memref<512x256xbf16, #tpu.memory_space<vmem>>, vector<512x256xbf16>
    %cst_9 = arith.constant dense<0.000000e+00> : vector<8x256xf32>
    %11 = tpu.matmul %9, %10, %cst_9 {dimension_numbers = #tpu.dot_dimension_numbers<[1], [0], [0], [1], [0, 0, 1, 1], [], []>} : vector<8x512xbf16>, vector<512x256xbf16>, vector<8x256xf32> -> vector<8x256xf32>
    %12 = vector.broadcast %8 : vector<1x256xf32> to vector<8x256xf32>
    %13 = arith.addf %11, %12 : vector<8x256xf32>
    %cst_10 = arith.constant 0.000000e+00 : f32
    %14 = vector.broadcast %cst_10 : f32 to vector<8x256xf32>
    %15 = arith.maximumf %13, %14 : vector<8x256xf32>
    %c2 = arith.constant 2 : index
    %c0_11 = arith.constant 0 : index
    %16 = vector.load %arg5[%c2, %c0_11] : memref<8x512xf32, #tpu.memory_space<vmem>>, vector<1x128xf32>
    %17 = arith.truncf %15 : vector<8x256xf32> to vector<8x256xbf16>
    %c0_12 = arith.constant 0 : index
    %c0_13 = arith.constant 0 : index
    %18 = vector.load %arg4[%c0_12, %c0_13] : memref<256x128xbf16, #tpu.memory_space<vmem>>, vector<256x128xbf16>
    %cst_14 = arith.constant dense<0.000000e+00> : vector<8x128xf32>
    %19 = tpu.matmul %17, %18, %cst_14 {dimension_numbers = #tpu.dot_dimension_numbers<[1], [0], [0], [1], [0, 0, 1, 1], [], []>} : vector<8x256xbf16>, vector<256x128xbf16>, vector<8x128xf32> -> vector<8x128xf32>
    %20 = vector.broadcast %16 : vector<1x128xf32> to vector<8x128xf32>
    %21 = arith.addf %19, %20 : vector<8x128xf32>
    %cst_15 = arith.constant 0.000000e+00 : f32
    %22 = vector.broadcast %cst_15 : f32 to vector<8x128xf32>
    %23 = arith.maximumf %21, %22 : vector<8x128xf32>
    %c3 = arith.constant 3 : index
    %c0_16 = arith.constant 0 : index
    %24 = vector.load %arg5[%c3, %c0_16] : memref<8x512xf32, #tpu.memory_space<vmem>>, vector<1x128xf32>
    %25 = arith.truncf %24 : vector<1x128xf32> to vector<1x128xbf16>
    %26 = arith.truncf %23 : vector<8x128xf32> to vector<8x128xbf16>
    %cst_17 = arith.constant dense<0.000000e+00> : vector<1x8xf32>
    %27 = tpu.matmul %25, %26, %cst_17 {dimension_numbers = #tpu.dot_dimension_numbers<[1], [1], [0], [0], [0, 0, 1, 0], [], []>} : vector<1x128xbf16>, vector<8x128xbf16>, vector<1x8xf32> -> vector<1x8xf32>
    %c4 = arith.constant 4 : index
    %c0_18 = arith.constant 0 : index
    %28 = vector.load %arg5[%c4, %c0_18] : memref<8x512xf32, #tpu.memory_space<vmem>>, vector<1x1xf32>
    %29 = vector.broadcast %28 : vector<1x1xf32> to vector<1x8xf32>
    %30 = arith.addf %27, %29 : vector<1x8xf32>
    %31 = arith.negf %30 : vector<1x8xf32>
    %32 = math.exp %31 : vector<1x8xf32>
    %cst_19 = arith.constant 1.000000e+00 : f32
    %33 = vector.broadcast %cst_19 : f32 to vector<1x8xf32>
    %34 = arith.addf %33, %32 : vector<1x8xf32>
    %35 = arith.divf %33, %34 : vector<1x8xf32>
    %c0_20 = arith.constant 0 : index
    %c0_21 = arith.constant 0 : index
    %c0_22 = arith.constant 0 : index
    %36 = vector.load %arg6[%c0_20, %c0_21, %c0_22] : memref<1x1x8xf32, #tpu.memory_space<vmem>>, vector<1x1x8xf32>
    %37 = vector.shape_cast %36 : vector<1x1x8xf32> to vector<1x8xf32>
    %38 = vector.shape_cast %35 : vector<1x8xf32> to vector<1x1x8xf32>
    tpu.vector_store %arg6[%c0_20, %c0_21, %c0_22], %38 {strides = array<i32>} : memref<1x1x8xf32, #tpu.memory_space<vmem>>, vector<1x1x8xf32>,
    return
  }
  func.func @transform_0(%arg0: i32) -> (i32, i32) {
    %c0_i32 = arith.constant 0 : i32
    %c0_i32_0 = arith.constant 0 : i32
    return %arg0, %c0_i32 : i32, i32
  }
  func.func @transform_1(%arg0: i32) -> (i32, i32) {
    %c0_i32 = arith.constant 0 : i32
    %c0_i32_0 = arith.constant 0 : i32
    %c0_i32_1 = arith.constant 0 : i32
    return %c0_i32, %c0_i32_0 : i32, i32
  }
  func.func @transform_2(%arg0: i32) -> (i32, i32) {
    %c0_i32 = arith.constant 0 : i32
    %c0_i32_0 = arith.constant 0 : i32
    %c0_i32_1 = arith.constant 0 : i32
    return %c0_i32, %c0_i32_0 : i32, i32
  }
  func.func @transform_3(%arg0: i32) -> (i32, i32) {
    %c0_i32 = arith.constant 0 : i32
    %c0_i32_0 = arith.constant 0 : i32
    %c0_i32_1 = arith.constant 0 : i32
    return %c0_i32, %c0_i32_0 : i32, i32
  }
  func.func @transform_4(%arg0: i32) -> (i32, i32) {
    %c0_i32 = arith.constant 0 : i32
    %c0_i32_0 = arith.constant 0 : i32
    %c0_i32_1 = arith.constant 0 : i32
    return %c0_i32, %c0_i32_0 : i32, i32
  }
  func.func @transform_5(%arg0: i32) -> (i32, i32, i32) {
    %c0_i32 = arith.constant 0 : i32
    %c0_i32_0 = arith.constant 0 : i32
    %c0_i32_1 = arith.constant 0 : i32
    return %arg0, %c0_i32, %c0_i32_0 : i32, i32, i32
  }
}

</mosaic_0001>

<llo_original>
// kernel: discriminator_forward.1
$region0: #{discriminator_forward.1}
  #allocation0 [shape = 'u32[]', space=smem, size = 0x4, offset = 0x4, fixed_abs, tag = 'smem constant byte address 0x4 - core index']
  #allocation1 [shape = 'u32[72,128]{1,0:T(1,128)}', space=vmem, size = 0x9000, scoped, tag = 'internal scratch']
  %s0 = inlined_call_operand.vmem [shape: bf16[8,128], index: 0, kind: input, shape index: {}]
  %s1 = inlined_call_operand.vmem [shape: bf16[128,512], index: 1, kind: input, shape index: {}]
  %s2 = inlined_call_operand.vmem [shape: bf16[512,256], index: 2, kind: input, shape index: {}]
  %s3 = inlined_call_operand.vmem [shape: bf16[256,128], index: 3, kind: input, shape index: {}]
  %s4 = inlined_call_operand.vmem [shape: f32[8,512], index: 4, kind: input, shape index: {}]
  %s5 = inlined_call_operand.vmem [shape: f32[1,1,8], index: 5, kind: output, shape index: {}]
  %s6 = sld [smem:[#allocation0]]
  $region30: #{discriminator_forward.1} parent=0
    _
  %s8 = ssub.s32 1, %s6
  %s9 = scalar_select 0, %s8, %s6
  // Predicated region
  $region2: #{discriminator_forward.1} parent=0 // pred_check
    _
  $region3: #{discriminator_forward.1} parent=0 // pred_check_branch
    %11 = sbr.rel (0) target = $region5
  $region4: #{discriminator_forward.1} parent=0 // pred_region
    _
  $region5: #{discriminator_forward.1} parent=0 // pred_fallthru
    _
  // Predicated region
  $region6: #{discriminator_forward.1} parent=0 // pred_check
    _
  $region7: #{discriminator_forward.1} parent=0 // pred_check_branch
    %13 = sbr.rel (0) target = $region9
  $region8: #{discriminator_forward.1} parent=0 // pred_region
    _
  $region9: #{discriminator_forward.1} parent=0 // pred_fallthru
    _
  // Predicated region
  $region10: #{discriminator_forward.1} parent=0 // pred_check
    _
  $region11: #{discriminator_forward.1} parent=0 // pred_check_branch
    %15 = sbr.rel (0) target = $region13
  $region12: #{discriminator_forward.1} parent=0 // pred_region
    _
  $region13: #{discriminator_forward.1} parent=0 // pred_fallthru
    _
  // Predicated region
  $region14: #{discriminator_forward.1} parent=0 // pred_check
    _
  $region15: #{discriminator_forward.1} parent=0 // pred_check_branch
    %17 = sbr.rel (0) target = $region17
  $region16: #{discriminator_forward.1} parent=0 // pred_region
    _
  $region17: #{discriminator_forward.1} parent=0 // pred_fallthru
    _
  // Predicated region
  $region18: #{discriminator_forward.1} parent=0 // pred_check
    _
  $region19: #{discriminator_forward.1} parent=0 // pred_check_branch
    %19 = sbr.rel (0) target = $region21
  $region20: #{discriminator_forward.1} parent=0 // pred_region
    _
  $region21: #{discriminator_forward.1} parent=0 // pred_fallthru
    _
  %v21 = vld [vmem:[%s4] ss:$8 sm:$0xf]
  %v22 = vld [vmem:[%s0] sm:$0xf]
  %v23 = vld [vmem:[%s1] sm:$0xff]
  %v24 = vld [vmem:[%s1 + $0x8] sm:$0xff]
  %v25 = vld [vmem:[%s1 + $0x10] sm:$0xff]
  %v26 = vld [vmem:[%s1 + $0x18] sm:$0xff]
  %v27 = vld [vmem:[%s1 + $0x20] sm:$0xff]
  %v28 = vld [vmem:[%s1 + $0x28] sm:$0xff]
  %v29 = vld [vmem:[%s1 + $0x30] sm:$0xff]
  %v30 = vld [vmem:[%s1 + $0x38] sm:$0xff]
  %v31 = vld [vmem:[%s1 + $0x40] sm:$0xff]
  %v32 = vld [vmem:[%s1 + $0x48] sm:$0xff]
  %v33 = vld [vmem:[%s1 + $0x50] sm:$0xff]
  %v34 = vld [vmem:[%s1 + $0x58] sm:$0xff]
  %v35 = vld [vmem:[%s1 + $0x60] sm:$0xff]
  %v36 = vld [vmem:[%s1 + $0x68] sm:$0xff]
  %v37 = vld [vmem:[%s1 + $0x70] sm:$0xff]
  %v38 = vld [vmem:[%s1 + $0x78] sm:$0xff]
  %v39 = vld [vmem:[%s1 + $0x80] sm:$0xff]
  %v40 = vld [vmem:[%s1 + $0x88] sm:$0xff]
  %v41 = vld [vmem:[%s1 + $0x90] sm:$0xff]
  %v42 = vld [vmem:[%s1 + $0x98] sm:$0xff]
  %v43 = vld [vmem:[%s1 + $0xa0] sm:$0xff]
  %v44 = vld [vmem:[%s1 + $0xa8] sm:$0xff]
  %v45 = vld [vmem:[%s1 + $0xb0] sm:$0xff]
  %v46 = vld [vmem:[%s1 + $0xb8] sm:$0xff]
  %v47 = vld [vmem:[%s1 + $0xc0] sm:$0xff]
  %v48 = vld [vmem:[%s1 + $0xc8] sm:$0xff]
  %v49 = vld [vmem:[%s1 + $0xd0] sm:$0xff]
  %v50 = vld [vmem:[%s1 + $0xd8] sm:$0xff]
  %v51 = vld [vmem:[%s1 + $0xe0] sm:$0xff]
  %v52 = vld [vmem:[%s1 + $0xe8] sm:$0xff]
  %v53 = vld [vmem:[%s1 + $0xf0] sm:$0xff]
  %v54 = vld [vmem:[%s1 + $0xf8] sm:$0xff]
  %v56 = vperm.slane %v21, 0
  %v57 = vperm.slane %v21, 1
  %v58 = vperm.slane %v21, 2
  %v59 = vperm.slane %v21, 3
  %v96 = vunpack.c.l.b16 %v23
  %v97 = vunpack.c.h.b16 %v23
  %v98 = vunpack.c.l.b16 %v24
  %v99 = vunpack.c.h.b16 %v24
  %v100 = vunpack.c.l.b16 %v25
  %v101 = vunpack.c.h.b16 %v25
  %v102 = vunpack.c.l.b16 %v26
  %v103 = vunpack.c.h.b16 %v26
  %v104 = vunpack.c.l.b16 %v27
  %v105 = vunpack.c.h.b16 %v27
  %v106 = vunpack.c.l.b16 %v28
  %v107 = vunpack.c.h.b16 %v28
  %v108 = vunpack.c.l.b16 %v29
  %v109 = vunpack.c.h.b16 %v29
  %v110 = vunpack.c.l.b16 %v30
  %v111 = vunpack.c.h.b16 %v30
  %v112 = vunpack.c.l.b16 %v31
  %v113 = vunpack.c.h.b16 %v31
  %v114 = vunpack.c.l.b16 %v32
  %v115 = vunpack.c.h.b16 %v32
  %v116 = vunpack.c.l.b16 %v33
  %v117 = vunpack.c.h.b16 %v33
  %v118 = vunpack.c.l.b16 %v34
  %v119 = vunpack.c.h.b16 %v34
  %v120 = vunpack.c.l.b16 %v35
  %v121 = vunpack.c.h.b16 %v35
  %v122 = vunpack.c.l.b16 %v36
  %v123 = vunpack.c.h.b16 %v36
  %v124 = vunpack.c.l.b16 %v37
  %v125 = vunpack.c.h.b16 %v37
  %v126 = vunpack.c.l.b16 %v38
  %v127 = vunpack.c.h.b16 %v38
  %v128 = vunpack.c.l.b16 %v39
  %v129 = vunpack.c.h.b16 %v39
  %v130 = vunpack.c.l.b16 %v40
  %v131 = vunpack.c.h.b16 %v40
  %v132 = vunpack.c.l.b16 %v41
  %v133 = vunpack.c.h.b16 %v41
  %v134 = vunpack.c.l.b16 %v42
  %v135 = vunpack.c.h.b16 %v42
  %v136 = vunpack.c.l.b16 %v43
  %v137 = vunpack.c.h.b16 %v43
  %v138 = vunpack.c.l.b16 %v44
  %v139 = vunpack.c.h.b16 %v44
  %v140 = vunpack.c.l.b16 %v45
  %v141 = vunpack.c.h.b16 %v45
  %v142 = vunpack.c.l.b16 %v46
  %v143 = vunpack.c.h.b16 %v46
  %v144 = vunpack.c.l.b16 %v47
  %v145 = vunpack.c.h.b16 %v47
  %v146 = vunpack.c.l.b16 %v48
  %v147 = vunpack.c.h.b16 %v48
  %v148 = vunpack.c.l.b16 %v49
  %v149 = vunpack.c.h.b16 %v49
  %v150 = vunpack.c.l.b16 %v50
  %v151 = vunpack.c.h.b16 %v50
  %v152 = vunpack.c.l.b16 %v51
  %v153 = vunpack.c.h.b16 %v51
  %v154 = vunpack.c.l.b16 %v52
  %v155 = vunpack.c.h.b16 %v52
  %v156 = vunpack.c.l.b16 %v53
  %v157 = vunpack.c.h.b16 %v53
  %v158 = vunpack.c.l.b16 %v54
  %v159 = vunpack.c.h.b16 %v54
  %v160 = vpack.c.b16 %v100, %v96
  %v161 = vpack.c.b16 %v101, %v97
  %v162 = vpack.c.b16 %v102, %v98
  %v163 = vpack.c.b16 %v103, %v99
  %v164 = vpack.c.b16 %v108, %v104
  %v165 = vpack.c.b16 %v109, %v105
  %v166 = vpack.c.b16 %v110, %v106
  %v167 = vpack.c.b16 %v111, %v107
  %v168 = vpack.c.b16 %v116, %v112
  %v169 = vpack.c.b16 %v117, %v113
  %v170 = vpack.c.b16 %v118, %v114
  %v171 = vpack.c.b16 %v119, %v115
  %v172 = vpack.c.b16 %v124, %v120
  %v173 = vpack.c.b16 %v125, %v121
  %v174 = vpack.c.b16 %v126, %v122
  %v175 = vpack.c.b16 %v127, %v123
  %v176 = vpack.c.b16 %v132, %v128
  %v177 = vpack.c.b16 %v133, %v129
  %v178 = vpack.c.b16 %v134, %v130
  %v179 = vpack.c.b16 %v135, %v131
  %v180 = vpack.c.b16 %v140, %v136
  %v181 = vpack.c.b16 %v141, %v137
  %v182 = vpack.c.b16 %v142, %v138
  %v183 = vpack.c.b16 %v143, %v139
  %v184 = vpack.c.b16 %v148, %v144
  %v185 = vpack.c.b16 %v149, %v145
  %v186 = vpack.c.b16 %v150, %v146
  %v187 = vpack.c.b16 %v151, %v147
  %v188 = vpack.c.b16 %v156, %v152
  %v189 = vpack.c.b16 %v157, %v153
  %v190 = vpack.c.b16 %v158, %v154
  %v191 = vpack.c.b16 %v159, %v155
  %224 = vmatpush.bf16.msra.mxu0 %v188
  %225 = vmatpush.bf16.msra.mxu0 %v184
  %226 = vmatpush.bf16.msra.mxu0 %v180
  %227 = vmatpush.bf16.msra.mxu0 %v176
  %228 = vmatpush.bf16.msra.mxu0 %v172
  %229 = vmatpush.bf16.msra.mxu0 %v168
  %230 = vmatpush.bf16.msra.mxu0 %v164
  %231 = vmatpush.bf16.msra.mxu0 %v160
  %232 = vmatmul.bf16.gmra.mxu0 %v22
  %v233 = vpop.f32.mrf.mxu0
  %v234 = vadd.f32 %v56, %v233
  %v235 = vpop.f32.mrf.mxu0
  %236 = vdwg.mxu0
  %237 = vmatpush.bf16.msra.mxu0 %v189
  %238 = vmatpush.bf16.msra.mxu0 %v185
  %239 = vmatpush.bf16.msra.mxu0 %v181
  %240 = vmatpush.bf16.msra.mxu0 %v177
  %241 = vmatpush.bf16.msra.mxu0 %v173
  %242 = vmatpush.bf16.msra.mxu0 %v169
  %243 = vmatpush.bf16.msra.mxu0 %v165
  %244 = vmatpush.bf16.msra.mxu0 %v161
  %245 = vmatmul.bf16.gmra.mxu0 %v22
  %v246 = vpop.f32.mrf.mxu0
  %v247 = vadd.f32 %v57, %v246
  %v248 = vpop.f32.mrf.mxu0
  %249 = vdwg.mxu0
  %250 = vmatpush.bf16.msra.mxu0 %v190
  %251 = vmatpush.bf16.msra.mxu0 %v186
  %252 = vmatpush.bf16.msra.mxu0 %v182
  %253 = vmatpush.bf16.msra.mxu0 %v178
  %254 = vmatpush.bf16.msra.mxu0 %v174
  %255 = vmatpush.bf16.msra.mxu0 %v170
  %256 = vmatpush.bf16.msra.mxu0 %v166
  %257 = vmatpush.bf16.msra.mxu0 %v162
  %258 = vmatmul.bf16.gmra.mxu0 %v22
  %v259 = vpop.f32.mrf.mxu0
  %v260 = vadd.f32 %v58, %v259
  %v261 = vpop.f32.mrf.mxu0
  %262 = vdwg.mxu0
  %263 = vmatpush.bf16.msra.mxu0 %v191
  %264 = vmatpush.bf16.msra.mxu0 %v187
  %265 = vmatpush.bf16.msra.mxu0 %v183
  %266 = vmatpush.bf16.msra.mxu0 %v179
  %267 = vmatpush.bf16.msra.mxu0 %v175
  %268 = vmatpush.bf16.msra.mxu0 %v171
  %269 = vmatpush.bf16.msra.mxu0 %v167
  %270 = vmatpush.bf16.msra.mxu0 %v163
  %271 = vmatmul.bf16.gmra.mxu0 %v22
  %v272 = vpop.f32.mrf.mxu0
  %v273 = vadd.f32 %v59, %v272
  %v274 = vpop.f32.mrf.mxu0
  %275 = vdwg.mxu0
  %v276 = vmax.f32 %v234, 0.0
  %v277 = vmax.f32 %v247, 0.0
  %v278 = vmax.f32 %v260, 0.0
  %v279 = vmax.f32 %v273, 0.0
  %s280 = scalar_lea.vmem %s4, 1
  %v281 = vld [vmem:[%s280] ss:$8 sm:$0x3]
  %v282 = vpack.c.bf16 %v276, %v276
  %v283 = vpack.c.bf16 %v277, %v277
  %v284 = vpack.c.bf16 %v278, %v278
  %v285 = vpack.c.bf16 %v279, %v279
  %v286 = vld [vmem:[%s2] sm:$0xff]
  %v287 = vld [vmem:[%s2 + $0x8] sm:$0xff]
  %v288 = vld [vmem:[%s2 + $0x10] sm:$0xff]
  %v289 = vld [vmem:[%s2 + $0x18] sm:$0xff]
  %v290 = vld [vmem:[%s2 + $0x20] sm:$0xff]
  %v291 = vld [vmem:[%s2 + $0x28] sm:$0xff]
  %v292 = vld [vmem:[%s2 + $0x30] sm:$0xff]
  %v293 = vld [vmem:[%s2 + $0x38] sm:$0xff]
  %v294 = vld [vmem:[%s2 + $0x40] sm:$0xff]
  %v295 = vld [vmem:[%s2 + $0x48] sm:$0xff]
  %v296 = vld [vmem:[%s2 + $0x50] sm:$0xff]
  %v297 = vld [vmem:[%s2 + $0x58] sm:$0xff]
  %v298 = vld [vmem:[%s2 + $0x60] sm:$0xff]
  %v299 = vld [vmem:[%s2 + $0x68] sm:$0xff]
  %v300 = vld [vmem:[%s2 + $0x70] sm:$0xff]
  %v301 = vld [vmem:[%s2 + $0x78] sm:$0xff]
  %v302 = vld [vmem:[%s2 + $0x80] sm:$0xff]
  %v303 = vld [vmem:[%s2 + $0x88] sm:$0xff]
  %v304 = vld [vmem:[%s2 + $0x90] sm:$0xff]
  %v305 = vld [vmem:[%s2 + $0x98] sm:$0xff]
  %v306 = vld [vmem:[%s2 + $0xa0] sm:$0xff]
  %v307 = vld [vmem:[%s2 + $0xa8] sm:$0xff]
  %v308 = vld [vmem:[%s2 + $0xb0] sm:$0xff]
  %v309 = vld [vmem:[%s2 + $0xb8] sm:$0xff]
  %v310 = vld [vmem:[%s2 + $0xc0] sm:$0xff]
  %v311 = vld [vmem:[%s2 + $0xc8] sm:$0xff]
  %v312 = vld [vmem:[%s2 + $0xd0] sm:$0xff]
  %v313 = vld [vmem:[%s2 + $0xd8] sm:$0xff]
  %v314 = vld [vmem:[%s2 + $0xe0] sm:$0xff]
  %v315 = vld [vmem:[%s2 + $0xe8] sm:$0xff]
  %v316 = vld [vmem:[%s2 + $0xf0] sm:$0xff]
  %v317 = vld [vmem:[%s2 + $0xf8] sm:$0xff]
  %v318 = vld [vmem:[%s2 + $0x100] sm:$0xff]
  %v319 = vld [vmem:[%s2 + $0x108] sm:$0xff]
  %v320 = vld [vmem:[%s2 + $0x110] sm:$0xff]
  %v321 = vld [vmem:[%s2 + $0x118] sm:$0xff]
  %v322 = vld [vmem:[%s2 + $0x120] sm:$0xff]
  %v323 = vld [vmem:[%s2 + $0x128] sm:$0xff]
  %v324 = vld [vmem:[%s2 + $0x130] sm:$0xff]
  %v325 = vld [vmem:[%s2 + $0x138] sm:$0xff]
  %v326 = vld [vmem:[%s2 + $0x140] sm:$0xff]
  %v327 = vld [vmem:[%s2 + $0x148] sm:$0xff]
  %v328 = vld [vmem:[%s2 + $0x150] sm:$0xff]
  %v329 = vld [vmem:[%s2 + $0x158] sm:$0xff]
  %v330 = vld [vmem:[%s2 + $0x160] sm:$0xff]
  %v331 = vld [vmem:[%s2 + $0x168] sm:$0xff]
  %v332 = vld [vmem:[%s2 + $0x170] sm:$0xff]
  %v333 = vld [vmem:[%s2 + $0x178] sm:$0xff]
  %v334 = vld [vmem:[%s2 + $0x180] sm:$0xff]
  %v335 = vld [vmem:[%s2 + $0x188] sm:$0xff]
  %v336 = vld [vmem:[%s2 + $0x190] sm:$0xff]
  %v337 = vld [vmem:[%s2 + $0x198] sm:$0xff]
  %v338 = vld [vmem:[%s2 + $0x1a0] sm:$0xff]
  %v339 = vld [vmem:[%s2 + $0x1a8] sm:$0xff]
  %v340 = vld [vmem:[%s2 + $0x1b0] sm:$0xff]
  %v341 = vld [vmem:[%s2 + $0x1b8] sm:$0xff]
  %v342 = vld [vmem:[%s2 + $0x1c0] sm:$0xff]
  %v343 = vld [vmem:[%s2 + $0x1c8] sm:$0xff]
  %v344 = vld [vmem:[%s2 + $0x1d0] sm:$0xff]
  %v345 = vld [vmem:[%s2 + $0x1d8] sm:$0xff]
  %v346 = vld [vmem:[%s2 + $0x1e0] sm:$0xff]
  %v347 = vld [vmem:[%s2 + $0x1e8] sm:$0xff]
  %v348 = vld [vmem:[%s2 + $0x1f0] sm:$0xff]
  %v349 = vld [vmem:[%s2 + $0x1f8] sm:$0xff]
  %v351 = vperm.slane %v281, 0
  %v352 = vperm.slane %v281, 1
  %v419 = vunpack.c.l.b16 %v286
  %v420 = vunpack.c.h.b16 %v286
  %v421 = vunpack.c.l.b16 %v287
  %v422 = vunpack.c.h.b16 %v287
  %v423 = vunpack.c.l.b16 %v288
  %v424 = vunpack.c.h.b16 %v288
  %v425 = vunpack.c.l.b16 %v289
  %v426 = vunpack.c.h.b16 %v289
  %v427 = vunpack.c.l.b16 %v290
  %v428 = vunpack.c.h.b16 %v290
  %v429 = vunpack.c.l.b16 %v291
  %v430 = vunpack.c.h.b16 %v291
  %v431 = vunpack.c.l.b16 %v292
  %v432 = vunpack.c.h.b16 %v292
  %v433 = vunpack.c.l.b16 %v293
  %v434 = vunpack.c.h.b16 %v293
  %v435 = vunpack.c.l.b16 %v294
  %v436 = vunpack.c.h.b16 %v294
  %v437 = vunpack.c.l.b16 %v295
  %v438 = vunpack.c.h.b16 %v295
  %v439 = vunpack.c.l.b16 %v296
  %v440 = vunpack.c.h.b16 %v296
  %v441 = vunpack.c.l.b16 %v297
  %v442 = vunpack.c.h.b16 %v297
  %v443 = vunpack.c.l.b16 %v298
  %v444 = vunpack.c.h.b16 %v298
  %v445 = vunpack.c.l.b16 %v299
  %v446 = vunpack.c.h.b16 %v299
  %v447 = vunpack.c.l.b16 %v300
  %v448 = vunpack.c.h.b16 %v300
  %v449 = vunpack.c.l.b16 %v301
  %v450 = vunpack.c.h.b16 %v301
  %v451 = vunpack.c.l.b16 %v302
  %v452 = vunpack.c.h.b16 %v302
  %v453 = vunpack.c.l.b16 %v303
  %v454 = vunpack.c.h.b16 %v303
  %v455 = vunpack.c.l.b16 %v304
  %v456 = vunpack.c.h.b16 %v304
  %v457 = vunpack.c.l.b16 %v305
  %v458 = vunpack.c.h.b16 %v305
  %v459 = vunpack.c.l.b16 %v306
  %v460 = vunpack.c.h.b16 %v306
  %v461 = vunpack.c.l.b16 %v307
  %v462 = vunpack.c.h.b16 %v307
  %v463 = vunpack.c.l.b16 %v308
  %v464 = vunpack.c.h.b16 %v308
  %v465 = vunpack.c.l.b16 %v309
  %v466 = vunpack.c.h.b16 %v309
  %v467 = vunpack.c.l.b16 %v310
  %v468 = vunpack.c.h.b16 %v310
  %v469 = vunpack.c.l.b16 %v311
  %v470 = vunpack.c.h.b16 %v311
  %v471 = vunpack.c.l.b16 %v312
  %v472 = vunpack.c.h.b16 %v312
  %v473 = vunpack.c.l.b16 %v313
  %v474 = vunpack.c.h.b16 %v313
  %v475 = vunpack.c.l.b16 %v314
  %v476 = vunpack.c.h.b16 %v314
  %v477 = vunpack.c.l.b16 %v315
  %v478 = vunpack.c.h.b16 %v315
  %v479 = vunpack.c.l.b16 %v316
  %v480 = vunpack.c.h.b16 %v316
  %v481 = vunpack.c.l.b16 %v317
  %v482 = vunpack.c.h.b16 %v317
  %v483 = vunpack.c.l.b16 %v318
  %v484 = vunpack.c.h.b16 %v318
  %v485 = vunpack.c.l.b16 %v319
  %v486 = vunpack.c.h.b16 %v319
  %v487 = vunpack.c.l.b16 %v320
  %v488 = vunpack.c.h.b16 %v320
  %v489 = vunpack.c.l.b16 %v321
  %v490 = vunpack.c.h.b16 %v321
  %v491 = vunpack.c.l.b16 %v322
  %v492 = vunpack.c.h.b16 %v322
  %v493 = vunpack.c.l.b16 %v323
  %v494 = vunpack.c.h.b16 %v323
  %v495 = vunpack.c.l.b16 %v324
  %v496 = vunpack.c.h.b16 %v324
  %v497 = vunpack.c.l.b16 %v325
  %v498 = vunpack.c.h.b16 %v325
  %v499 = vunpack.c.l.b16 %v326
  %v500 = vunpack.c.h.b16 %v326
  %v501 = vunpack.c.l.b16 %v327
  %v502 = vunpack.c.h.b16 %v327
  %v503 = vunpack.c.l.b16 %v328
  %v504 = vunpack.c.h.b16 %v328
  %v505 = vunpack.c.l.b16 %v329
  %v506 = vunpack.c.h.b16 %v329
  %v507 = vunpack.c.l.b16 %v330
  %v508 = vunpack.c.h.b16 %v330
  %v509 = vunpack.c.l.b16 %v331
  %v510 = vunpack.c.h.b16 %v331
  %v511 = vunpack.c.l.b16 %v332
  %v512 = vunpack.c.h.b16 %v332
  %v513 = vunpack.c.l.b16 %v333
  %v514 = vunpack.c.h.b16 %v333
  %v515 = vunpack.c.l.b16 %v334
  %v516 = vunpack.c.h.b16 %v334
  %v517 = vunpack.c.l.b16 %v335
  %v518 = vunpack.c.h.b16 %v335
  %v519 = vunpack.c.l.b16 %v336
  %v520 = vunpack.c.h.b16 %v336
  %v521 = vunpack.c.l.b16 %v337
  %v522 = vunpack.c.h.b16 %v337
  %v523 = vunpack.c.l.b16 %v338
  %v524 = vunpack.c.h.b16 %v338
  %v525 = vunpack.c.l.b16 %v339
  %v526 = vunpack.c.h.b16 %v339
  %v527 = vunpack.c.l.b16 %v340
  %v528 = vunpack.c.h.b16 %v340
  %v529 = vunpack.c.l.b16 %v341
  %v530 = vunpack.c.h.b16 %v341
  %v531 = vunpack.c.l.b16 %v342
  %v532 = vunpack.c.h.b16 %v342
  %v533 = vunpack.c.l.b16 %v343
  %v534 = vunpack.c.h.b16 %v343
  %v535 = vunpack.c.l.b16 %v344
  %v536 = vunpack.c.h.b16 %v344
  %v537 = vunpack.c.l.b16 %v345
  %v538 = vunpack.c.h.b16 %v345
  %v539 = vunpack.c.l.b16 %v346
  %v540 = vunpack.c.h.b16 %v346
  %v541 = vunpack.c.l.b16 %v347
  %v542 = vunpack.c.h.b16 %v347
  %v543 = vunpack.c.l.b16 %v348
  %v544 = vunpack.c.h.b16 %v348
  %v545 = vunpack.c.l.b16 %v349
  %v546 = vunpack.c.h.b16 %v349
  %v547 = vpack.c.b16 %v421, %v419
  %v548 = vpack.c.b16 %v422, %v420
  %v549 = vpack.c.b16 %v425, %v423
  %v550 = vpack.c.b16 %v426, %v424
  %v551 = vpack.c.b16 %v429, %v427
  %v552 = vpack.c.b16 %v430, %v428
  %v553 = vpack.c.b16 %v433, %v431
  %v554 = vpack.c.b16 %v434, %v432
  %v555 = vpack.c.b16 %v437, %v435
  %v556 = vpack.c.b16 %v438, %v436
  %v557 = vpack.c.b16 %v441, %v439
  %v558 = vpack.c.b16 %v442, %v440
  %v559 = vpack.c.b16 %v445, %v443
  %v560 = vpack.c.b16 %v446, %v444
  %v561 = vpack.c.b16 %v449, %v447
  %v562 = vpack.c.b16 %v450, %v448
  %v563 = vpack.c.b16 %v453, %v451
  %v564 = vpack.c.b16 %v454, %v452
  %v565 = vpack.c.b16 %v457, %v455
  %v566 = vpack.c.b16 %v458, %v456
  %v567 = vpack.c.b16 %v461, %v459
  %v568 = vpack.c.b16 %v462, %v460
  %v569 = vpack.c.b16 %v465, %v463
  %v570 = vpack.c.b16 %v466, %v464
  %v571 = vpack.c.b16 %v469, %v467
  %v572 = vpack.c.b16 %v470, %v468
  %v573 = vpack.c.b16 %v473, %v471
  %v574 = vpack.c.b16 %v474, %v472
  %v575 = vpack.c.b16 %v477, %v475
  %v576 = vpack.c.b16 %v478, %v476
  %v577 = vpack.c.b16 %v481, %v479
  %v578 = vpack.c.b16 %v482, %v480
  %v579 = vpack.c.b16 %v485, %v483
  %v580 = vpack.c.b16 %v486, %v484
  %v581 = vpack.c.b16 %v489, %v487
  %v582 = vpack.c.b16 %v490, %v488
  %v583 = vpack.c.b16 %v493, %v491
  %v584 = vpack.c.b16 %v494, %v492
  %v585 = vpack.c.b16 %v497, %v495
  %v586 = vpack.c.b16 %v498, %v496
  %v587 = vpack.c.b16 %v501, %v499
  %v588 = vpack.c.b16 %v502, %v500
  %v589 = vpack.c.b16 %v505, %v503
  %v590 = vpack.c.b16 %v506, %v504
  %v591 = vpack.c.b16 %v509, %v507
  %v592 = vpack.c.b16 %v510, %v508
  %v593 = vpack.c.b16 %v513, %v511
  %v594 = vpack.c.b16 %v514, %v512
  %v595 = vpack.c.b16 %v517, %v515
  %v596 = vpack.c.b16 %v518, %v516
  %v597 = vpack.c.b16 %v521, %v519
  %v598 = vpack.c.b16 %v522, %v520
  %v599 = vpack.c.b16 %v525, %v523
  %v600 = vpack.c.b16 %v526, %v524
  %v601 = vpack.c.b16 %v529, %v527
  %v602 = vpack.c.b16 %v530, %v528
  %v603 = vpack.c.b16 %v533, %v531
  %v604 = vpack.c.b16 %v534, %v532
  %v605 = vpack.c.b16 %v537, %v535
  %v606 = vpack.c.b16 %v538, %v536
  %v607 = vpack.c.b16 %v541, %v539
  %v608 = vpack.c.b16 %v542, %v540
  %v609 = vpack.c.b16 %v545, %v543
  %v610 = vpack.c.b16 %v546, %v544
  %675 = vmatpush.bf16.msra.mxu0 %v561
  %676 = vmatpush.bf16.msra.mxu0 %v559
  %677 = vmatpush.bf16.msra.mxu0 %v557
  %678 = vmatpush.bf16.msra.mxu0 %v555
  %679 = vmatpush.bf16.msra.mxu0 %v553
  %680 = vmatpush.bf16.msra.mxu0 %v551
  %681 = vmatpush.bf16.msra.mxu0 %v549
  %682 = vmatpush.bf16.msra.mxu0 %v547
  %683 = vmatmul.bf16.gmra.mxu0 %v282
  %v684 = vpop.f32.mrf.mxu0
  %v685 = vadd.f32 %v351, %v684
  %v686 = vpop.f32.mrf.mxu0
  %687 = vdwg.mxu0
  %688 = vmatpush.bf16.msra.mxu0 %v577
  %689 = vmatpush.bf16.msra.mxu0 %v575
  %690 = vmatpush.bf16.msra.mxu0 %v573
  %691 = vmatpush.bf16.msra.mxu0 %v571
  %692 = vmatpush.bf16.msra.mxu0 %v569
  %693 = vmatpush.bf16.msra.mxu0 %v567
  %694 = vmatpush.bf16.msra.mxu0 %v565
  %695 = vmatpush.bf16.msra.mxu0 %v563
  %696 = vmatmul.bf16.gmra.mxu0 %v283
  %v697 = vpop.f32.mrf.mxu0
  %v698 = vadd.f32 %v685, %v697
  %v699 = vpop.f32.mrf.mxu0
  %700 = vdwg.mxu0
  %701 = vmatpush.bf16.msra.mxu0 %v593
  %702 = vmatpush.bf16.msra.mxu0 %v591
  %703 = vmatpush.bf16.msra.mxu0 %v589
  %704 = vmatpush.bf16.msra.mxu0 %v587
  %705 = vmatpush.bf16.msra.mxu0 %v585
  %706 = vmatpush.bf16.msra.mxu0 %v583
  %707 = vmatpush.bf16.msra.mxu0 %v581
  %708 = vmatpush.bf16.msra.mxu0 %v579
  %709 = vmatmul.bf16.gmra.mxu0 %v284
  %v710 = vpop.f32.mrf.mxu0
  %v711 = vadd.f32 %v698, %v710
  %v712 = vpop.f32.mrf.mxu0
  %713 = vdwg.mxu0
  %714 = vmatpush.bf16.msra.mxu0 %v609
  %715 = vmatpush.bf16.msra.mxu0 %v607
  %716 = vmatpush.bf16.msra.mxu0 %v605
  %717 = vmatpush.bf16.msra.mxu0 %v603
  %718 = vmatpush.bf16.msra.mxu0 %v601
  %719 = vmatpush.bf16.msra.mxu0 %v599
  %720 = vmatpush.bf16.msra.mxu0 %v597
  %721 = vmatpush.bf16.msra.mxu0 %v595
  %722 = vmatmul.bf16.gmra.mxu0 %v285
  %v723 = vpop.f32.mrf.mxu0
  %v724 = vadd.f32 %v711, %v723
  %v725 = vpop.f32.mrf.mxu0
  %726 = vdwg.mxu0
  %727 = vmatpush.bf16.msra.mxu0 %v562
  %728 = vmatpush.bf16.msra.mxu0 %v560
  %729 = vmatpush.bf16.msra.mxu0 %v558
  %730 = vmatpush.bf16.msra.mxu0 %v556
  %731 = vmatpush.bf16.msra.mxu0 %v554
  %732 = vmatpush.bf16.msra.mxu0 %v552
  %733 = vmatpush.bf16.msra.mxu0 %v550
  %734 = vmatpush.bf16.msra.mxu0 %v548
  %735 = vmatmul.bf16.gmra.mxu0 %v282
  %v736 = vpop.f32.mrf.mxu0
  %v737 = vadd.f32 %v352, %v736
  %v738 = vpop.f32.mrf.mxu0
  %739 = vdwg.mxu0
  %740 = vmatpush.bf16.msra.mxu0 %v578
  %741 = vmatpush.bf16.msra.mxu0 %v576
  %742 = vmatpush.bf16.msra.mxu0 %v574
  %743 = vmatpush.bf16.msra.mxu0 %v572
  %744 = vmatpush.bf16.msra.mxu0 %v570
  %745 = vmatpush.bf16.msra.mxu0 %v568
  %746 = vmatpush.bf16.msra.mxu0 %v566
  %747 = vmatpush.bf16.msra.mxu0 %v564
  %748 = vmatmul.bf16.gmra.mxu0 %v283
  %v749 = vpop.f32.mrf.mxu0
  %v750 = vadd.f32 %v737, %v749
  %v751 = vpop.f32.mrf.mxu0
  %752 = vdwg.mxu0
  %753 = vmatpush.bf16.msra.mxu0 %v594
  %754 = vmatpush.bf16.msra.mxu0 %v592
  %755 = vmatpush.bf16.msra.mxu0 %v590
  %756 = vmatpush.bf16.msra.mxu0 %v588
  %757 = vmatpush.bf16.msra.mxu0 %v586
  %758 = vmatpush.bf16.msra.mxu0 %v584
  %759 = vmatpush.bf16.msra.mxu0 %v582
  %760 = vmatpush.bf16.msra.mxu0 %v580
  %761 = vmatmul.bf16.gmra.mxu0 %v284
  %v762 = vpop.f32.mrf.mxu0
  %v763 = vadd.f32 %v750, %v762
  %v764 = vpop.f32.mrf.mxu0
  %765 = vdwg.mxu0
  %766 = vmatpush.bf16.msra.mxu0 %v610
  %767 = vmatpush.bf16.msra.mxu0 %v608
  %768 = vmatpush.bf16.msra.mxu0 %v606
  %769 = vmatpush.bf16.msra.mxu0 %v604
  %770 = vmatpush.bf16.msra.mxu0 %v602
  %771 = vmatpush.bf16.msra.mxu0 %v600
  %772 = vmatpush.bf16.msra.mxu0 %v598
  %773 = vmatpush.bf16.msra.mxu0 %v596
  %774 = vmatmul.bf16.gmra.mxu0 %v285
  %v775 = vpop.f32.mrf.mxu0
  %v776 = vadd.f32 %v763, %v775
  %v777 = vpop.f32.mrf.mxu0
  %778 = vdwg.mxu0
  %v779 = vmax.f32 %v724, 0.0
  %v780 = vmax.f32 %v776, 0.0
  %v781 = vld [vmem:[%s4 + $0x2] ss:$0 sm:$0xff]
  %v782 = vpack.c.bf16 %v779, %v779
  %v783 = vpack.c.bf16 %v780, %v780
  %v784 = vld [vmem:[%s3] sm:$0xf]
  %v785 = vld [vmem:[%s3 + $0x4] sm:$0xf]
  %v786 = vld [vmem:[%s3 + $0x8] sm:$0xf]
  %v787 = vld [vmem:[%s3 + $0xc] sm:$0xf]
  %v788 = vld [vmem:[%s3 + $0x10] sm:$0xf]
  %v789 = vld [vmem:[%s3 + $0x14] sm:$0xf]
  %v790 = vld [vmem:[%s3 + $0x18] sm:$0xf]
  %v791 = vld [vmem:[%s3 + $0x1c] sm:$0xf]
  %v792 = vld [vmem:[%s3 + $0x20] sm:$0xf]
  %v793 = vld [vmem:[%s3 + $0x24] sm:$0xf]
  %v794 = vld [vmem:[%s3 + $0x28] sm:$0xf]
  %v795 = vld [vmem:[%s3 + $0x2c] sm:$0xf]
  %v796 = vld [vmem:[%s3 + $0x30] sm:$0xf]
  %v797 = vld [vmem:[%s3 + $0x34] sm:$0xf]
  %v798 = vld [vmem:[%s3 + $0x38] sm:$0xf]
  %v799 = vld [vmem:[%s3 + $0x3c] sm:$0xf]
  %v800 = vld [vmem:[%s3 + $0x40] sm:$0xf]
  %v801 = vld [vmem:[%s3 + $0x44] sm:$0xf]
  %v802 = vld [vmem:[%s3 + $0x48] sm:$0xf]
  %v803 = vld [vmem:[%s3 + $0x4c] sm:$0xf]
  %v804 = vld [vmem:[%s3 + $0x50] sm:$0xf]
  %v805 = vld [vmem:[%s3 + $0x54] sm:$0xf]
  %v806 = vld [vmem:[%s3 + $0x58] sm:$0xf]
  %v807 = vld [vmem:[%s3 + $0x5c] sm:$0xf]
  %v808 = vld [vmem:[%s3 + $0x60] sm:$0xf]
  %v809 = vld [vmem:[%s3 + $0x64] sm:$0xf]
  %v810 = vld [vmem:[%s3 + $0x68] sm:$0xf]
  %v811 = vld [vmem:[%s3 + $0x6c] sm:$0xf]
  %v812 = vld [vmem:[%s3 + $0x70] sm:$0xf]
  %v813 = vld [vmem:[%s3 + $0x74] sm:$0xf]
  %v814 = vld [vmem:[%s3 + $0x78] sm:$0xf]
  %v815 = vld [vmem:[%s3 + $0x7c] sm:$0xf]
  %v848 = vunpack.c.l.b16 %v784
  %v849 = vunpack.c.l.b16 %v785
  %v850 = vunpack.c.l.b16 %v786
  %v851 = vunpack.c.l.b16 %v787
  %v852 = vunpack.c.l.b16 %v788
  %v853 = vunpack.c.l.b16 %v789
  %v854 = vunpack.c.l.b16 %v790
  %v855 = vunpack.c.l.b16 %v791
  %v856 = vunpack.c.l.b16 %v792
  %v857 = vunpack.c.l.b16 %v793
  %v858 = vunpack.c.l.b16 %v794
  %v859 = vunpack.c.l.b16 %v795
  %v860 = vunpack.c.l.b16 %v796
  %v861 = vunpack.c.l.b16 %v797
  %v862 = vunpack.c.l.b16 %v798
  %v863 = vunpack.c.l.b16 %v799
  %v864 = vunpack.c.l.b16 %v800
  %v865 = vunpack.c.l.b16 %v801
  %v866 = vunpack.c.l.b16 %v802
  %v867 = vunpack.c.l.b16 %v803
  %v868 = vunpack.c.l.b16 %v804
  %v869 = vunpack.c.l.b16 %v805
  %v870 = vunpack.c.l.b16 %v806
  %v871 = vunpack.c.l.b16 %v807
  %v872 = vunpack.c.l.b16 %v808
  %v873 = vunpack.c.l.b16 %v809
  %v874 = vunpack.c.l.b16 %v810
  %v875 = vunpack.c.l.b16 %v811
  %v876 = vunpack.c.l.b16 %v812
  %v877 = vunpack.c.l.b16 %v813
  %v878 = vunpack.c.l.b16 %v814
  %v879 = vunpack.c.l.b16 %v815
  %v880 = vpack.c.b16 %v849, %v848
  %v881 = vpack.c.b16 %v851, %v850
  %v882 = vpack.c.b16 %v853, %v852
  %v883 = vpack.c.b16 %v855, %v854
  %v884 = vpack.c.b16 %v857, %v856
  %v885 = vpack.c.b16 %v859, %v858
  %v886 = vpack.c.b16 %v861, %v860
  %v887 = vpack.c.b16 %v863, %v862
  %v888 = vpack.c.b16 %v865, %v864
  %v889 = vpack.c.b16 %v867, %v866
  %v890 = vpack.c.b16 %v869, %v868
  %v891 = vpack.c.b16 %v871, %v870
  %v892 = vpack.c.b16 %v873, %v872
  %v893 = vpack.c.b16 %v875, %v874
  %v894 = vpack.c.b16 %v877, %v876
  %v895 = vpack.c.b16 %v879, %v878
  %912 = vmatpush.bf16.msra.mxu0 %v887
  %913 = vmatpush.bf16.msra.mxu0 %v886
  %914 = vmatpush.bf16.msra.mxu0 %v885
  %915 = vmatpush.bf16.msra.mxu0 %v884
  %916 = vmatpush.bf16.msra.mxu0 %v883
  %917 = vmatpush.bf16.msra.mxu0 %v882
  %918 = vmatpush.bf16.msra.mxu0 %v881
  %919 = vmatpush.bf16.msra.mxu0 %v880
  %920 = vmatmul.bf16.gmra.mxu0 %v782
  %v921 = vpop.f32.mrf.mxu0
  %v922 = vadd.f32 %v781, %v921
  %v923 = vpop.f32.mrf.mxu0
  %924 = vdwg.mxu0
  %925 = vmatpush.bf16.msra.mxu0 %v895
  %926 = vmatpush.bf16.msra.mxu0 %v894
  %927 = vmatpush.bf16.msra.mxu0 %v893
  %928 = vmatpush.bf16.msra.mxu0 %v892
  %929 = vmatpush.bf16.msra.mxu0 %v891
  %930 = vmatpush.bf16.msra.mxu0 %v890
  %931 = vmatpush.bf16.msra.mxu0 %v889
  %932 = vmatpush.bf16.msra.mxu0 %v888
  %933 = vmatmul.bf16.gmra.mxu0 %v783
  %v934 = vpop.f32.mrf.mxu0
  %v935 = vadd.f32 %v922, %v934
  %v936 = vpop.f32.mrf.mxu0
  %937 = vdwg.mxu0
  %v938 = vmax.f32 %v935, 0.0
  %v939 = vld [vmem:[%s4 + $0x3] ss:$0 sm:$0xff]
  %v940 = vpack.c.bf16 %v939, %v939
  %v941 = vpack.c.bf16 %v938, %v938
  %v942 = vld [vmem:[%s4 + $0x4] ss:$0 sm:$0xff]
  %944 = vset.pattern.permute.xlu0 0
  %945 = vperm.xlu0 %944, %v942
  %v946 = vpop.permute.xlu0 %945
  %948 = vmatpush.bf16.xpose.msra.mxu0 0
  %949 = vmatpush.bf16.xpose.msra.mxu0 0
  %950 = vmatpush.bf16.xpose.msra.mxu0 0
  %951 = vmatpush.bf16.xpose.msra.mxu0 0
  %952 = vmatpush.bf16.xpose.msra.mxu0 0
  %953 = vmatpush.bf16.xpose.msra.mxu0 0
  %954 = vmatpush.bf16.xpose.msra.mxu0 0
  %955 = vmatpush.bf16.xpose.msra.mxu0 %v941
  %956 = vmatmul.bf16.gmra.mxu0 %v940
  %v957 = vpop.f32.mrf.mxu0
  %v958 = vadd.f32 %v946, %v957
  %v959 = vpop.f32.mrf.mxu0
  %960 = vdwg.mxu0
  %v961 = vxor.u32 %v958, 2147483648
  %v962 = vmul.f32 %v961, 1.442695
  %v963 = vpow.pop %v962
  %v964 = vadd.f32 %v963, 1.0
  %v965 = vrcp.pop %v964
  %v966 = vmul.f32 %v964, %v965
  %v967 = vsub.f32 1.0, %v966
  %v968 = vmul.f32 %v965, %v967
  %v969 = vadd.f32 %v965, %v968
  %vm970 = vweird.f32 %v964
  %vm971 = vweird.f32 %v965
  %vm972 = vmor %vm970, %vm971
  %v973 = vsel %vm972, %v965, %v969
  %v974 = vand.u32 2147483647, %v964
  %vm975 = vcmp.eq.f32.partialorder %v974, 8.507059e+37
  %v976 = vand.u32 %v964, 2147483648
  %v977 = vor.u32 1.1754944e-38, %v976
  %v978 = vsel %vm975, %v977, %v973
  %v979 = vmul.f32 1.0, %v978
  %vm980 = vcmask 57344
  %981 = vst.msk [vmem:[%s5] sm:$0x1] %vm980, %v979
  // Predicated region
  $region22: #{discriminator_forward.1} parent=0 // pred_check
    _
  $region23: #{discriminator_forward.1} parent=0 // pred_check_branch
    %983 = sbr.rel (0) target = $region25
  $region24: #{discriminator_forward.1} parent=0 // pred_region
    _
  $region25: #{discriminator_forward.1} parent=0 // pred_fallthru
    _
  // Predicated region
  $region26: #{discriminator_forward.1} parent=0 // pred_check
    _
  $region27: #{discriminator_forward.1} parent=0 // pred_check_branch
    %985 = sbr.rel (0) target = $region29
  $region28: #{discriminator_forward.1} parent=0 // pred_region
    _
  $region29: #{discriminator_forward.1} parent=0 // pred_fallthru
    _

</llo_original>
